<compile_context>
chip_gen: v5e
topology: v5e:2x2
jax: 0.10.0
libtpu: 0.0.40
codegen_flags: <defaults>
</compile_context>

<pallas_src>
import jax
import jax.numpy as jnp
from jax.experimental import pallas as pl
from jax.experimental.pallas import tpu as pltpu

NUM_LAYERS = 5          # fc3..fc7
EPS = 1e-5              # nn.BatchNorm1d default eps
NORM = 1.0              # `norm` global in the reference code


def disc_kernel(x_ref, w_ref, b_ref, wf_ref, bf_ref, out_ref):
    """One branch per grid step: 5 x (folded Linear+BN -> ReLU) -> dot-product head."""
    h = x_ref[...].astype(jnp.float32)                       # (B, H)
    for l in range(NUM_LAYERS):                              # static unroll, L=5
        z = jnp.dot(h, w_ref[l], preferred_element_type=jnp.float32)  # (B, H)
        h = jnp.maximum(z + b_ref[l:l + 1, :], 0.0)          # bias + ReLU
    # Final Linear(H, 1): VPU mul + lane reduction (keeps the MXU out of the tail).
    out_ref[...] = (jnp.sum(h * wf_ref[...], axis=-1, keepdims=True)
                    + bf_ref[...])                           # (B, 1)


def domain_ddisc_forward(x, domain, folded):
    """folded: dict of branch-stacked, BN-folded params (leading axis = 2 branches)."""
    # `domain` is transformed in the reference (`domain.unsqueeze(1) / norm`) but
    # never consumed by the outputs -> intentionally unused here.
    del domain
    B, H = x.shape
    out = pl.pallas_call(
        disc_kernel,
        out_shape=jax.ShapeDtypeStruct((2, B, 1), jnp.float32),
        grid=(2,),                                           # branch axis: m / s
        in_specs=[
            pl.BlockSpec((B, H), lambda br: (0, 0)),                       # x (shared)
            pl.BlockSpec((None, NUM_LAYERS, H, H), lambda br: (br, 0, 0, 0)),  # W'
            pl.BlockSpec((None, NUM_LAYERS, H), lambda br: (br, 0, 0)),        # b'
            pl.BlockSpec((None, 1, H), lambda br: (br, 0, 0)),                 # wf (row)
            pl.BlockSpec((None, 1, 1), lambda br: (br, 0, 0)),                 # bf
        ],
        out_specs=pl.BlockSpec((None, B, 1), lambda br: (br, 0, 0)),
        compiler_params=pltpu.CompilerParams(
            dimension_semantics=("parallel",)),              # m/s on separate TCs (v7x)
    )(x, folded["w"], folded["b"], folded["wf"], folded["bf"])
    return out[0], out[1]


def make_branch_params(key, hidden):
    """Deterministic synthetic raw parameters (PyTorch-style Linear init ranges)."""
    ks = jax.random.split(key, 8)
    bound = 1.0 / jnp.sqrt(jnp.float32(hidden))
    # Linear weights stored pre-transposed to (in, out) for the kernel matmul.
    w = jax.random.uniform(ks[0], (NUM_LAYERS, hidden, hidden), jnp.float32, -bound, bound)
    b = jax.random.uniform(ks[1], (NUM_LAYERS, hidden), jnp.float32, -bound, bound)
    # BatchNorm1d params / running stats (nontrivial to exercise the fold).
    gamma = 1.0 + 0.1 * jax.random.normal(ks[2], (NUM_LAYERS, hidden), jnp.float32)
    beta = 0.1 * jax.random.normal(ks[3], (NUM_LAYERS, hidden), jnp.float32)
    mu = 0.1 * jax.random.normal(ks[4], (NUM_LAYERS, hidden), jnp.float32)
    var = 0.5 + jax.random.uniform(ks[5], (NUM_LAYERS, hidden), jnp.float32)
    # Final Linear(H, 1) stored as a row vector (lane-dense).
    wf = jax.random.uniform(ks[6], (hidden,), jnp.float32, -bound, bound)
    bf = jax.random.uniform(ks[7], (1,), jnp.float32, -bound, bound)
    return dict(w=w, b=b, gamma=gamma, beta=beta, mu=mu, var=var, wf=wf, bf=bf)


def fold_branch(p):
    """One-time fold of eval-mode BatchNorm1d + Linear bias into the weights."""
    scale = p["gamma"] * jax.lax.rsqrt(p["var"] + EPS)        # (L, H)
    w = p["w"] * scale[:, None, :]                            # scale output features
    b = p["b"] * scale + (p["beta"] - p["mu"] * scale)        # (L, H)
    wf = p["wf"][None, :]                                     # (1, H)
    bf = p["bf"][None, :]                                     # (1, 1)
    return dict(w=w, b=b, wf=wf, bf=bf)


def stack_branches(fm, fs):
    """Stack m / s branch params along a leading axis of 2 for the grid=(2,) kernel."""
    return {k: jnp.stack([fm[k], fs[k]], axis=0) for k in fm}


def ref_branch(x, p):
    """Pure-JAX reference of one branch (un-folded Linear -> BN(eval) -> ReLU chain)."""
    h = x
    for l in range(NUM_LAYERS):
        z = h @ p["w"][l] + p["b"][l]
        z = (z - p["mu"][l]) / jnp.sqrt(p["var"][l] + EPS) * p["gamma"][l] + p["beta"][l]
        h = jnp.maximum(z, 0.0)
    return h @ p["wf"][:, None] + p["bf"]


if __name__ == "__main__":
    B, HIDDEN = 8, 32

    key = jax.random.PRNGKey(0)
    k_x, k_d, k_m, k_s = jax.random.split(key, 4)
    x = jax.random.normal(k_x, (B, HIDDEN), jnp.float32)
    domain = jax.random.normal(k_d, (B,), jnp.float32)

    params_m = make_branch_params(k_m, HIDDEN)
    params_s = make_branch_params(k_s, HIDDEN)
    folded = stack_branches(fold_branch(params_m), fold_branch(params_s))

    x_m, x_s = domain_ddisc_forward(x, domain, folded)
    jax.block_until_ready((x_m, x_s))

    # Sanity check against the pure-JAX (un-folded) reference.
    ref_m = ref_branch(x, params_m)
    ref_s = ref_branch(x, params_s)
    assert x_m.shape == (B, 1) and x_s.shape == (B, 1)
    assert jnp.allclose(x_m, ref_m, atol=1e-4, rtol=1e-4)
    assert jnp.allclose(x_s, ref_s, atol=1e-4, rtol=1e-4)

    print("KERNEL_OK")
</pallas_src>

<mosaic_0001>
module attributes {stable_mosaic.version = 11 : i64} {
  func.func @disc_kernel(%arg0: i32, %arg1: memref<8x32xf32, #tpu.memory_space<vmem>>, %arg2: memref<1x5x32x32xf32, #tpu.memory_space<vmem>>, %arg3: memref<1x5x32xf32, #tpu.memory_space<vmem>>, %arg4: memref<1x1x32xf32, #tpu.memory_space<vmem>>, %arg5: memref<1x1x1xf32, #tpu.memory_space<vmem>>, %arg6: memref<1x8x1xf32, #tpu.memory_space<vmem>>) attributes {dimension_semantics = [#tpu.dimension_semantics<parallel>], iteration_bounds = array<i64: 2>, scalar_prefetch = 0 : i64, scratch_operands = 0 : i64, tpu.core_type = #tpu.core_type<tc>, window_params = [{pipeline_mode = #tpu.pipeline_mode<synchronous>, transform_indices = @transform_0, window_bounds = array<i64: 8, 32>}, {transform_indices = @transform_1, window_bounds = array<i64: 1, 5, 32, 32>}, {transform_indices = @transform_2, window_bounds = array<i64: 1, 5, 32>}, {transform_indices = @transform_3, window_bounds = array<i64: 1, 1, 32>}, {transform_indices = @transform_4, window_bounds = array<i64: 1, 1, 1>}, {transform_indices = @transform_5, window_bounds = array<i64: 1, 8, 1>}]} {
    %c0 = arith.constant 0 : index
    %c0_0 = arith.constant 0 : index
    %0 = vector.load %arg1[%c0, %c0_0] : memref<8x32xf32, #tpu.memory_space<vmem>>, vector<8x32xf32>
    %c0_1 = arith.constant 0 : index
    %c0_2 = arith.constant 0 : index
    %c0_3 = arith.constant 0 : index
    %c0_4 = arith.constant 0 : index
    %1 = vector.load %arg2[%c0_1, %c0_2, %c0_3, %c0_4] : memref<1x5x32x32xf32, #tpu.memory_space<vmem>>, vector<1x1x32x32xf32>
    %2 = vector.shape_cast %1 : vector<1x1x32x32xf32> to vector<32x32xf32>
    %cst = arith.constant dense<0.000000e+00> : vector<8x32xf32>
    %3 = tpu.matmul %0, %2, %cst {dimension_numbers = #tpu.dot_dimension_numbers<[1], [0], [0], [1], [0, 0, 1, 1], [], []>} : vector<8x32xf32>, vector<32x32xf32>, vector<8x32xf32> -> vector<8x32xf32>
    %c0_5 = arith.constant 0 : index
    %c0_6 = arith.constant 0 : index
    %c0_7 = arith.constant 0 : index
    %4 = vector.load %arg3[%c0_5, %c0_6, %c0_7] : memref<1x5x32xf32, #tpu.memory_space<vmem>>, vector<1x1x32xf32>
    %5 = vector.shape_cast %4 : vector<1x1x32xf32> to vector<1x32xf32>
    %6 = vector.broadcast %5 : vector<1x32xf32> to vector<8x32xf32>
    %7 = arith.addf %3, %6 : vector<8x32xf32>
    %cst_8 = arith.constant 0.000000e+00 : f32
    %8 = vector.broadcast %cst_8 : f32 to vector<8x32xf32>
    %9 = arith.maximumf %7, %8 : vector<8x32xf32>
    %c0_9 = arith.constant 0 : index
    %c1 = arith.constant 1 : index
    %c0_10 = arith.constant 0 : index
    %c0_11 = arith.constant 0 : index
    %10 = vector.load %arg2[%c0_9, %c1, %c0_10, %c0_11] : memref<1x5x32x32xf32, #tpu.memory_space<vmem>>, vector<1x1x32x32xf32>
    %11 = vector.shape_cast %10 : vector<1x1x32x32xf32> to vector<32x32xf32>
    %cst_12 = arith.constant dense<0.000000e+00> : vector<8x32xf32>
    %12 = tpu.matmul %9, %11, %cst_12 {dimension_numbers = #tpu.dot_dimension_numbers<[1], [0], [0], [1], [0, 0, 1, 1], [], []>} : vector<8x32xf32>, vector<32x32xf32>, vector<8x32xf32> -> vector<8x32xf32>
    %c0_13 = arith.constant 0 : index
    %c1_14 = arith.constant 1 : index
    %c0_15 = arith.constant 0 : index
    %13 = vector.load %arg3[%c0_13, %c1_14, %c0_15] : memref<1x5x32xf32, #tpu.memory_space<vmem>>, vector<1x1x32xf32>
    %14 = vector.shape_cast %13 : vector<1x1x32xf32> to vector<1x32xf32>
    %15 = vector.broadcast %14 : vector<1x32xf32> to vector<8x32xf32>
    %16 = arith.addf %12, %15 : vector<8x32xf32>
    %cst_16 = arith.constant 0.000000e+00 : f32
    %17 = vector.broadcast %cst_16 : f32 to vector<8x32xf32>
    %18 = arith.maximumf %16, %17 : vector<8x32xf32>
    %c0_17 = arith.constant 0 : index
    %c2 = arith.constant 2 : index
    %c0_18 = arith.constant 0 : index
    %c0_19 = arith.constant 0 : index
    %19 = vector.load %arg2[%c0_17, %c2, %c0_18, %c0_19] : memref<1x5x32x32xf32, #tpu.memory_space<vmem>>, vector<1x1x32x32xf32>
    %20 = vector.shape_cast %19 : vector<1x1x32x32xf32> to vector<32x32xf32>
    %cst_20 = arith.constant dense<0.000000e+00> : vector<8x32xf32>
    %21 = tpu.matmul %18, %20, %cst_20 {dimension_numbers = #tpu.dot_dimension_numbers<[1], [0], [0], [1], [0, 0, 1, 1], [], []>} : vector<8x32xf32>, vector<32x32xf32>, vector<8x32xf32> -> vector<8x32xf32>
    %c0_21 = arith.constant 0 : index
    %c2_22 = arith.constant 2 : index
    %c0_23 = arith.constant 0 : index
    %22 = vector.load %arg3[%c0_21, %c2_22, %c0_23] : memref<1x5x32xf32, #tpu.memory_space<vmem>>, vector<1x1x32xf32>
    %23 = vector.shape_cast %22 : vector<1x1x32xf32> to vector<1x32xf32>
    %24 = vector.broadcast %23 : vector<1x32xf32> to vector<8x32xf32>
    %25 = arith.addf %21, %24 : vector<8x32xf32>
    %cst_24 = arith.constant 0.000000e+00 : f32
    %26 = vector.broadcast %cst_24 : f32 to vector<8x32xf32>
    %27 = arith.maximumf %25, %26 : vector<8x32xf32>
    %c0_25 = arith.constant 0 : index
    %c3 = arith.constant 3 : index
    %c0_26 = arith.constant 0 : index
    %c0_27 = arith.constant 0 : index
    %28 = vector.load %arg2[%c0_25, %c3, %c0_26, %c0_27] : memref<1x5x32x32xf32, #tpu.memory_space<vmem>>, vector<1x1x32x32xf32>
    %29 = vector.shape_cast %28 : vector<1x1x32x32xf32> to vector<32x32xf32>
    %cst_28 = arith.constant dense<0.000000e+00> : vector<8x32xf32>
    %30 = tpu.matmul %27, %29, %cst_28 {dimension_numbers = #tpu.dot_dimension_numbers<[1], [0], [0], [1], [0, 0, 1, 1], [], []>} : vector<8x32xf32>, vector<32x32xf32>, vector<8x32xf32> -> vector<8x32xf32>
    %c0_29 = arith.constant 0 : index
    %c3_30 = arith.constant 3 : index
    %c0_31 = arith.constant 0 : index
    %31 = vector.load %arg3[%c0_29, %c3_30, %c0_31] : memref<1x5x32xf32, #tpu.memory_space<vmem>>, vector<1x1x32xf32>
    %32 = vector.shape_cast %31 : vector<1x1x32xf32> to vector<1x32xf32>
    %33 = vector.broadcast %32 : vector<1x32xf32> to vector<8x32xf32>
    %34 = arith.addf %30, %33 : vector<8x32xf32>
    %cst_32 = arith.constant 0.000000e+00 : f32
    %35 = vector.broadcast %cst_32 : f32 to vector<8x32xf32>
    %36 = arith.maximumf %34, %35 : vector<8x32xf32>
    %c0_33 = arith.constant 0 : index
    %c4 = arith.constant 4 : index
    %c0_34 = arith.constant 0 : index
    %c0_35 = arith.constant 0 : index
    %37 = vector.load %arg2[%c0_33, %c4, %c0_34, %c0_35] : memref<1x5x32x32xf32, #tpu.memory_space<vmem>>, vector<1x1x32x32xf32>
    %38 = vector.shape_cast %37 : vector<1x1x32x32xf32> to vector<32x32xf32>
    %cst_36 = arith.constant dense<0.000000e+00> : vector<8x32xf32>
    %39 = tpu.matmul %36, %38, %cst_36 {dimension_numbers = #tpu.dot_dimension_numbers<[1], [0], [0], [1], [0, 0, 1, 1], [], []>} : vector<8x32xf32>, vector<32x32xf32>, vector<8x32xf32> -> vector<8x32xf32>
    %c0_37 = arith.constant 0 : index
    %c4_38 = arith.constant 4 : index
    %c0_39 = arith.constant 0 : index
    %40 = vector.load %arg3[%c0_37, %c4_38, %c0_39] : memref<1x5x32xf32, #tpu.memory_space<vmem>>, vector<1x1x32xf32>
    %41 = vector.shape_cast %40 : vector<1x1x32xf32> to vector<1x32xf32>
    %42 = vector.broadcast %41 : vector<1x32xf32> to vector<8x32xf32>
    %43 = arith.addf %39, %42 : vector<8x32xf32>
    %cst_40 = arith.constant 0.000000e+00 : f32
    %44 = vector.broadcast %cst_40 : f32 to vector<8x32xf32>
    %45 = arith.maximumf %43, %44 : vector<8x32xf32>
    %c0_41 = arith.constant 0 : index
    %c0_42 = arith.constant 0 : index
    %c0_43 = arith.constant 0 : index
    %46 = vector.load %arg4[%c0_41, %c0_42, %c0_43] : memref<1x1x32xf32, #tpu.memory_space<vmem>>, vector<1x1x32xf32>
    %47 = vector.shape_cast %46 : vector<1x1x32xf32> to vector<1x32xf32>
    %48 = vector.broadcast %47 : vector<1x32xf32> to vector<8x32xf32>
    %49 = arith.mulf %45, %48 : vector<8x32xf32>
    %cst_44 = arith.constant dense<0.000000e+00> : vector<8xf32>
    %50 = vector.multi_reduction <add>, %49, %cst_44 [1] : vector<8x32xf32> to vector<8xf32>
    %51 = vector.shape_cast %50 : vector<8xf32> to vector<8x1xf32>
    %c0_45 = arith.constant 0 : index
    %c0_46 = arith.constant 0 : index
    %c0_47 = arith.constant 0 : index
    %52 = vector.load %arg5[%c0_45, %c0_46, %c0_47] : memref<1x1x1xf32, #tpu.memory_space<vmem>>, vector<1x1x1xf32>
    %53 = vector.shape_cast %52 : vector<1x1x1xf32> to vector<1x1xf32>
    %54 = vector.broadcast %53 : vector<1x1xf32> to vector<8x1xf32>
    %55 = arith.addf %51, %54 : vector<8x1xf32>
    %c0_48 = arith.constant 0 : index
    %c0_49 = arith.constant 0 : index
    %c0_50 = arith.constant 0 : index
    %56 = vector.load %arg6[%c0_48, %c0_49, %c0_50] : memref<1x8x1xf32, #tpu.memory_space<vmem>>, vector<1x8x1xf32>
    %57 = vector.shape_cast %56 : vector<1x8x1xf32> to vector<8x1xf32>
    %58 = vector.shape_cast %55 : vector<8x1xf32> to vector<1x8x1xf32>
    tpu.vector_store %arg6[%c0_48, %c0_49, %c0_50], %58 {strides = array<i32>} : memref<1x8x1xf32, #tpu.memory_space<vmem>>, vector<1x8x1xf32>,
    return
  }
  func.func @transform_0(%arg0: i32) -> (i32, i32) {
    %c0_i32 = arith.constant 0 : i32
    %c0_i32_0 = arith.constant 0 : i32
    %c0_i32_1 = arith.constant 0 : i32
    return %c0_i32, %c0_i32_0 : i32, i32
  }
  func.func @transform_1(%arg0: i32) -> (i32, i32, i32, i32) {
    %c0_i32 = arith.constant 0 : i32
    %c0_i32_0 = arith.constant 0 : i32
    %c0_i32_1 = arith.constant 0 : i32
    %c0_i32_2 = arith.constant 0 : i32
    return %arg0, %c0_i32, %c0_i32_0, %c0_i32_1 : i32, i32, i32, i32
  }
  func.func @transform_2(%arg0: i32) -> (i32, i32, i32) {
    %c0_i32 = arith.constant 0 : i32
    %c0_i32_0 = arith.constant 0 : i32
    %c0_i32_1 = arith.constant 0 : i32
    return %arg0, %c0_i32, %c0_i32_0 : i32, i32, i32
  }
  func.func @transform_3(%arg0: i32) -> (i32, i32, i32) {
    %c0_i32 = arith.constant 0 : i32
    %c0_i32_0 = arith.constant 0 : i32
    %c0_i32_1 = arith.constant 0 : i32
    return %arg0, %c0_i32, %c0_i32_0 : i32, i32, i32
  }
  func.func @transform_4(%arg0: i32) -> (i32, i32, i32) {
    %c0_i32 = arith.constant 0 : i32
    %c0_i32_0 = arith.constant 0 : i32
    %c0_i32_1 = arith.constant 0 : i32
    return %arg0, %c0_i32, %c0_i32_0 : i32, i32, i32
  }
  func.func @transform_5(%arg0: i32) -> (i32, i32, i32) {
    %c0_i32 = arith.constant 0 : i32
    %c0_i32_0 = arith.constant 0 : i32
    %c0_i32_1 = arith.constant 0 : i32
    return %arg0, %c0_i32, %c0_i32_0 : i32, i32, i32
  }
}

</mosaic_0001>

<llo_original>
// kernel: tpu_custom_call.1
$region0: #{tpu_custom_call.1}
  #allocation0 [shape = 'u32[]', space=smem, size = 0x4, offset = 0x4, fixed_abs, tag = 'smem constant byte address 0x4 - core index']
  #allocation1 [shape = 'u32[72,128]{1,0:T(1,128)}', space=vmem, size = 0x9000, scoped, tag = 'internal scratch']
  %s0 = inlined_call_operand.vmem [shape: f32[8,32], index: 0, kind: input, shape index: {}]
  %s1 = inlined_call_operand.hbm [shape: f32[2,5,32,32], index: 1, kind: input, shape index: {}]
  %s2 = inlined_call_operand.vmem [shape: f32[2,5,32], index: 2, kind: input, shape index: {}]
  %s3 = inlined_call_operand.vmem [shape: f32[2,1,32], index: 3, kind: input, shape index: {}]
  %s4 = inlined_call_operand.vmem [shape: f32[2,1,1], index: 4, kind: input, shape index: {}]
  %s5 = inlined_call_operand.vmem [shape: f32[2,8,1], index: 5, kind: output, shape index: {}]
  %s6 = sld [smem:[#allocation0]]
  $region57: #{tpu_custom_call.1} parent=0
    _
  %s8 = ssub.s32 1, %s6
  %s9 = scalar_select 0, %s8, %s6
  $region1: #{tpu_custom_call.1} parent=0
    #allocation2 [shape = 'u8[163840]{0}', space=vmem, size = 0x28000, scoped, tag = 'input window, operand 1']
    #allocation3 [shape = 's32[2]{0}', space=sflag, size = 0x8, scoped, tag = 'scoped memory for tpu_custom_call.1']
    %10 = vsyncpa [#allocation3], 0
    %s11 = scalar_lea.sflag [#allocation3], 1
    %12 = vsyncpa %s11, 0
    loop: start=0, step=1, limit=4
    $region2: #{tpu_custom_call.1} parent=1 // loop_pre_header
      _
    $region3: #{tpu_custom_call.1} parent=1 // loop_header
      %s14 = sphi 0, %s18
      %p15 = scmp.ge.s32.totalorder %s14, 4
      %s22 = sphi 0, %s22
      %s24 = sphi 0, %s22
      %s25 = sphi 0, %s24
      %s39 = sphi 0, %s25
      %s45 = sphi 0, %s47
      %s48 = sphi 0, %s45
      %s49 = sphi 0, %s48
      %s65 = sphi 0, %s49
      %s71 = sphi 0, %s73
      %s74 = sphi 0, %s71
      %s75 = sphi 0, %s74
      %s91 = sphi 0, %s75
      %s97 = sphi 0, %s99
      %s100 = sphi 0, %s97
      %s101 = sphi 0, %s100
      %s117 = sphi 0, %s101
      %s123 = sphi 0, %s125
      %s126 = sphi 0, %s123
      %s127 = sphi 0, %s126
      %s143 = sphi 0, %s127
      %s149 = sphi 0, %s151
      %s152 = sphi 0, %s149
      %s153 = sphi 0, %s152
      %s169 = sphi 0, %s153
    $region4: #{tpu_custom_call.1} parent=1 // loop_header_branch
      %17 = sbr.rel (%p15) target = $region8
    $region5: #{tpu_custom_call.1} parent=1 // loop_body
      %s19 = ssub.s32 %s14, 1
      %s20 = ssub.s32 %s14, 2
      %s21 = sadd.s32 %s14, 1
      %s23 = sadd.s32 %s22, 1
      %p26 = scmp.eq.s32.totalorder %s14, 1
      %p27 = scmp.ne.s32.totalorder %s22, %s24
      %p28 = scmp.eq.s32.totalorder %s14, 0
      %p29 = por %p27, %p28
      %p30 = scmp.ne.s32.totalorder %s22, %s24
      %p31 = scmp.eq.s32.totalorder %s19, 1
      %p32 = por %p30, %p31
      %p33 = scmp.ne.s32.totalorder %s24, %s25
      %p34 = scmp.eq.s32.totalorder %s19, 0
      %p35 = por %p33, %p34
      %p36 = scmp.ne.s32.totalorder %s24, %s25
      %p37 = scmp.eq.s32.totalorder %s20, 1
      %p38 = por %p36, %p37
      %p40 = scmp.ne.s32.totalorder %s25, %s39
      %p41 = scmp.eq.s32.totalorder %s20, 0
      %p42 = por %p40, %p41
      %s43 = ssub.s32 %s14, %s21
      %p44 = scmp.eq.s32.totalorder %s43, 0
      %s46 = sadd.s32 %s45, 1
      %s47 = scalar_select %p44, %s45, %s46
      %p50 = pneg %p44
      %p51 = scmp.eq.s32.totalorder %s14, 1
      %p52 = por %p50, %p51
      %p53 = scmp.ne.s32.totalorder %s45, %s48
      %p54 = scmp.eq.s32.totalorder %s14, 0
      %p55 = por %p53, %p54
      %p56 = scmp.ne.s32.totalorder %s45, %s48
      %p57 = scmp.eq.s32.totalorder %s19, 1
      %p58 = por %p56, %p57
      %p59 = scmp.ne.s32.totalorder %s48, %s49
      %p60 = scmp.eq.s32.totalorder %s19, 0
      %p61 = por %p59, %p60
      %p62 = scmp.ne.s32.totalorder %s48, %s49
      %p63 = scmp.eq.s32.totalorder %s20, 1
      %p64 = por %p62, %p63
      %p66 = scmp.ne.s32.totalorder %s49, %s65
      %p67 = scmp.eq.s32.totalorder %s20, 0
      %p68 = por %p66, %p67
      %s69 = ssub.s32 %s14, %s21
      %p70 = scmp.eq.s32.totalorder %s69, 0
      %s72 = sadd.s32 %s71, 1
      %s73 = scalar_select %p70, %s71, %s72
      %p76 = pneg %p70
      %p77 = scmp.eq.s32.totalorder %s14, 1
      %p78 = por %p76, %p77
      %p79 = scmp.ne.s32.totalorder %s71, %s74
      %p80 = scmp.eq.s32.totalorder %s14, 0
      %p81 = por %p79, %p80
      %p82 = scmp.ne.s32.totalorder %s71, %s74
      %p83 = scmp.eq.s32.totalorder %s19, 1
      %p84 = por %p82, %p83
      %p85 = scmp.ne.s32.totalorder %s74, %s75
      %p86 = scmp.eq.s32.totalorder %s19, 0
      %p87 = por %p85, %p86
      %p88 = scmp.ne.s32.totalorder %s74, %s75
      %p89 = scmp.eq.s32.totalorder %s20, 1
      %p90 = por %p88, %p89
      %p92 = scmp.ne.s32.totalorder %s75, %s91
      %p93 = scmp.eq.s32.totalorder %s20, 0
      %p94 = por %p92, %p93
      %s95 = ssub.s32 %s14, %s21
      %p96 = scmp.eq.s32.totalorder %s95, 0
      %s98 = sadd.s32 %s97, 1
      %s99 = scalar_select %p96, %s97, %s98
      %p102 = pneg %p96
      %p103 = scmp.eq.s32.totalorder %s14, 1
      %p104 = por %p102, %p103
      %p105 = scmp.ne.s32.totalorder %s97, %s100
      %p106 = scmp.eq.s32.totalorder %s14, 0
      %p107 = por %p105, %p106
      %p108 = scmp.ne.s32.totalorder %s97, %s100
      %p109 = scmp.eq.s32.totalorder %s19, 1
      %p110 = por %p108, %p109
      %p111 = scmp.ne.s32.totalorder %s100, %s101
      %p112 = scmp.eq.s32.totalorder %s19, 0
      %p113 = por %p111, %p112
      %p114 = scmp.ne.s32.totalorder %s100, %s101
      %p115 = scmp.eq.s32.totalorder %s20, 1
      %p116 = por %p114, %p115
      %p118 = scmp.ne.s32.totalorder %s101, %s117
      %p119 = scmp.eq.s32.totalorder %s20, 0
      %p120 = por %p118, %p119
      %s121 = ssub.s32 %s14, %s21
      %p122 = scmp.eq.s32.totalorder %s121, 0
      %s124 = sadd.s32 %s123, 1
      %s125 = scalar_select %p122, %s123, %s124
      %p128 = pneg %p122
      %p129 = scmp.eq.s32.totalorder %s14, 1
      %p130 = por %p128, %p129
      %p131 = scmp.ne.s32.totalorder %s123, %s126
      %p132 = scmp.eq.s32.totalorder %s14, 0
      %p133 = por %p131, %p132
      %p134 = scmp.ne.s32.totalorder %s123, %s126
      %p135 = scmp.eq.s32.totalorder %s19, 1
      %p136 = por %p134, %p135
      %p137 = scmp.ne.s32.totalorder %s126, %s127
      %p138 = scmp.eq.s32.totalorder %s19, 0
      %p139 = por %p137, %p138
      %p140 = scmp.ne.s32.totalorder %s126, %s127
      %p141 = scmp.eq.s32.totalorder %s20, 1
      %p142 = por %p140, %p141
      %p144 = scmp.ne.s32.totalorder %s127, %s143
      %p145 = scmp.eq.s32.totalorder %s20, 0
      %p146 = por %p144, %p145
      %s147 = ssub.s32 %s14, %s21
      %p148 = scmp.eq.s32.totalorder %s147, 0
      %s150 = sadd.s32 %s149, 1
      %s151 = scalar_select %p148, %s149, %s150
      %p154 = pneg %p148
      %p155 = scmp.eq.s32.totalorder %s14, 1
      %p156 = por %p154, %p155
      %p157 = scmp.ne.s32.totalorder %s149, %s152
      %p158 = scmp.eq.s32.totalorder %s14, 0
      %p159 = por %p157, %p158
      %p160 = scmp.ne.s32.totalorder %s149, %s152
      %p161 = scmp.eq.s32.totalorder %s19, 1
      %p162 = por %p160, %p161
      %p163 = scmp.ne.s32.totalorder %s152, %s153
      %p164 = scmp.eq.s32.totalorder %s19, 0
      %p165 = por %p163, %p164
      %p166 = scmp.ne.s32.totalorder %s152, %s153
      %p167 = scmp.eq.s32.totalorder %s20, 1
      %p168 = por %p166, %p167
      %p170 = scmp.ne.s32.totalorder %s153, %s169
      %p171 = scmp.eq.s32.totalorder %s20, 0
      %p172 = por %p170, %p171
      %p173 = scmp.le.s32.totalorder 1, %s14
      %p174 = scmp.lt.s32.totalorder %s14, 3
      %p175 = pnand %p173, %p174
      %p176 = pneg %p175
      // Predicated region
      $region9: #{tpu_custom_call.1} parent=5 // pred_check
        _
      $region10: #{tpu_custom_call.1} parent=5 // pred_check_branch
        %178 = sbr.rel (%p175) target = $region12
      $region11: #{tpu_custom_call.1} parent=5 // pred_region
        %s179 = ssub.s32 %s14, 1
        // Predicated region
        $region13: #{tpu_custom_call.1} parent=11 // pred_check
          %p180 = pneg %p35
        $region14: #{tpu_custom_call.1} parent=11 // pred_check_branch
          %182 = sbr.rel (%p180) target = $region16
        $region15: #{tpu_custom_call.1} parent=11 // pred_region
          _
        $region16: #{tpu_custom_call.1} parent=11 // pred_fallthru
          _
      $region12: #{tpu_custom_call.1} parent=5 // pred_fallthru
        _
      %p183 = scmp.lt.s32.totalorder %s14, 2
      // Predicated region
      $region17: #{tpu_custom_call.1} parent=5 // pred_check
        %p184 = pneg %p183
      $region18: #{tpu_custom_call.1} parent=5 // pred_check_branch
        %186 = sbr.rel (%p184) target = $region20
      $region19: #{tpu_custom_call.1} parent=5 // pred_region
        // Predicated region
        $region21: #{tpu_custom_call.1} parent=19 // pred_check
          %p187 = pneg %p55
        $region22: #{tpu_custom_call.1} parent=19 // pred_check_branch
          %189 = sbr.rel (%p187) target = $region24
        $region23: #{tpu_custom_call.1} parent=19 // pred_region
          %s190 = sand.u32 %s45, 1
          %s191 = scalar_lea.sflag [#allocation3], %s190
          %s192 = sand.u32 %s45, 1
          %s193 = smul.addr %s192, 160
          %s194 = scalar_lea.vmem [#allocation2], %s193
          %196 = vsyncadd %s191, 0
          %s197 = smul.addr %s14, 20
          %s198 = smul.addr %s197, 8
          %s199 = scalar_lea.hbm %s1, %s198
          %s200 = sshll.u32 %s199, 4
          %s201 = int_to_ptr.hbm [resolvable:$true] %s200
          %s202 = sshll.u32 %s194, 4
          %s203 = int_to_ptr.vmem [resolvable:$true] %s202
          %208 = dma.hbm_to_vmem [thread:$0]  %s201, 2560, %s203, %s191, 128, 128, 8
        $region24: #{tpu_custom_call.1} parent=19 // pred_fallthru
          _
        // Predicated region
        $region25: #{tpu_custom_call.1} parent=19 // pred_check
          %p209 = pneg %p81
        $region26: #{tpu_custom_call.1} parent=19 // pred_check_branch
          %211 = sbr.rel (%p209) target = $region28
        $region27: #{tpu_custom_call.1} parent=19 // pred_region
          %p212 = scmp.lt.s32.totalorder %s14, 1
          %s213 = scalar_select %p212, %s14, 1
          %s214 = smul.addr %s213, 8
          %s215 = scalar_lea.vmem %s2, %s214
        $region28: #{tpu_custom_call.1} parent=19 // pred_fallthru
          _
        // Predicated region
        $region29: #{tpu_custom_call.1} parent=19 // pred_check
          %p216 = pneg %p107
        $region30: #{tpu_custom_call.1} parent=19 // pred_check_branch
          %218 = sbr.rel (%p216) target = $region32
        $region31: #{tpu_custom_call.1} parent=19 // pred_region
          %p219 = scmp.lt.s32.totalorder %s14, 1
          %s220 = scalar_select %p219, %s14, 1
          %s221 = scalar_lea.vmem %s3, %s220
        $region32: #{tpu_custom_call.1} parent=19 // pred_fallthru
          _
        // Predicated region
        $region33: #{tpu_custom_call.1} parent=19 // pred_check
          %p222 = pneg %p133
        $region34: #{tpu_custom_call.1} parent=19 // pred_check_branch
          %224 = sbr.rel (%p222) target = $region36
        $region35: #{tpu_custom_call.1} parent=19 // pred_region
          %p225 = scmp.lt.s32.totalorder %s14, 1
          %s226 = scalar_select %p225, %s14, 1
          %s227 = scalar_lea.vmem %s4, %s226
        $region36: #{tpu_custom_call.1} parent=19 // pred_fallthru
          _
      $region20: #{tpu_custom_call.1} parent=5 // pred_fallthru
        _
      %p228 = scmp.le.s32.totalorder 1, %s14
      %p229 = scmp.lt.s32.totalorder %s14, 3
      %p230 = pnand %p228, %p229
      %p231 = pneg %p230
      // Predicated region
      $region37: #{tpu_custom_call.1} parent=5 // pred_check
        _
      $region38: #{tpu_custom_call.1} parent=5 // pred_check_branch
        %233 = sbr.rel (%p230) target = $region40
      $region39: #{tpu_custom_call.1} parent=5 // pred_region
        %s234 = ssub.s32 %s14, 1
        %s235 = sand.u32 %s48, 1
        %s236 = scalar_lea.sflag [#allocation3], %s235
        %s237 = sand.u32 %s48, 1
        %s238 = smul.addr %s237, 160
        %s239 = scalar_lea.vmem [#allocation2], %s238
        // Predicated region
        $region41: #{tpu_custom_call.1} parent=39 // pred_check
          %p240 = pneg %p61
        $region42: #{tpu_custom_call.1} parent=39 // pred_check_branch
          %242 = sbr.rel (%p240) target = $region44
        $region43: #{tpu_custom_call.1} parent=39 // pred_region
          %244 = dma.done %s236, 2560
        $region44: #{tpu_custom_call.1} parent=39 // pred_fallthru
          _
        %p245 = pneg %p35
        %p246 = pneg %p32
        %s247 = sand.u32 %s48, 1
        %s248 = scalar_lea.sflag [#allocation3], %s247
        %s249 = sand.u32 %s48, 1
        %s250 = smul.addr %s249, 160
        %s251 = scalar_lea.vmem [#allocation2], %s250
        %p252 = pneg %p61
        %p253 = pneg %p58
        %p254 = scmp.lt.s32.totalorder %s19, 1
        %s255 = scalar_select %p254, %s19, 1
        %s256 = smul.addr %s255, 8
        %s257 = scalar_lea.vmem %s2, %s256
        %p258 = pneg %p87
        %p259 = pneg %p84
        %p260 = scmp.lt.s32.totalorder %s19, 1
        %s261 = scalar_select %p260, %s19, 1
        %s262 = scalar_lea.vmem %s3, %s261
        %p263 = pneg %p113
        %p264 = pneg %p110
        %p265 = scmp.lt.s32.totalorder %s19, 1
        %s266 = scalar_select %p265, %s19, 1
        %s267 = scalar_lea.vmem %s4, %s266
        %p268 = pneg %p139
        %p269 = pneg %p136
        %p270 = pneg %p165
        %p271 = pneg %p162
        %p272 = scmp.lt.s32.totalorder %s19, 1
        %s273 = scalar_select %p272, %s19, 1
        %s274 = smul.addr %s273, 8
        %s275 = scalar_lea.vmem %s5, %s274
        %p276 = scmp.lt.s32.totalorder %s19, 1
        %s277 = scalar_select %p276, %s19, 1
        %s278 = smul.addr %s277, 8
        %s279 = scalar_lea.vmem %s2, %s278
        %p280 = scmp.lt.s32.totalorder %s19, 1
        %s281 = scalar_select %p280, %s19, 1
        %s282 = scalar_lea.vmem %s3, %s281
        %p283 = scmp.lt.s32.totalorder %s19, 1
        %s284 = scalar_select %p283, %s19, 1
        %s285 = scalar_lea.vmem %s4, %s284
        %p286 = scmp.lt.s32.totalorder %s19, 1
        %s287 = scalar_select %p286, %s19, 1
        %s288 = smul.addr %s287, 8
        %s289 = scalar_lea.vmem %s5, %s288
        %v290 = vld [vmem:[%s0] sm:$0xff]
        %v291 = vld [vmem:[%s239] sm:$0xff]
        %v292 = vld [vmem:[%s239 + $0x8] sm:$0xff]
        %v293 = vld [vmem:[%s239 + $0x10] sm:$0xff]
        %v294 = vld [vmem:[%s239 + $0x18] sm:$0xff]
        %v295 = vld [vmem:[%s279] sm:$0x1]
        %v296 = vperm.slane %v295, 0
        %vm297 = vcmask 261120
        %v299 = vsel %vm297, %v290, 0
        %301 = vmatpush.msra.mxu0 0.0
        %302 = vmatpush.msra.mxu0 0.0
        %303 = vmatpush.msra.mxu0 0.0
        %304 = vmatpush.msra.mxu0 0.0
        %305 = vmatpush.msra.mxu0 0.0
        %306 = vmatpush.msra.mxu0 0.0
        %307 = vmatpush.msra.mxu0 0.0
        %308 = vmatpush.msra.mxu0 0.0
        %309 = vmatpush.msra.mxu0 0.0
        %310 = vmatpush.msra.mxu0 0.0
        %311 = vmatpush.msra.mxu0 0.0
        %312 = vmatpush.msra.mxu0 0.0
        %313 = vmatpush.msra.mxu0 %v294
        %314 = vmatpush.msra.mxu0 %v293
        %315 = vmatpush.msra.mxu0 %v292
        %316 = vmatpush.msra.mxu0 %v291
        %317 = vmatmul.f32.gmra.mxu0 %v299
        %v318 = vpop.f32.mrf.mxu0
        %v319 = vadd.f32 %v296, %v318
        %320 = vdwg.mxu0
        %v321 = vmax.f32 %v319, 0.0
        %s322 = scalar_lea.vmem %s239, 32 [#allocation2]
        %v323 = vld [vmem:[%s322] sm:$0xff]
        %v324 = vld [vmem:[%s322 + $0x8] sm:$0xff]
        %v325 = vld [vmem:[%s322 + $0x10] sm:$0xff]
        %v326 = vld [vmem:[%s322 + $0x18] sm:$0xff]
        %v327 = vld [vmem:[%s279 + $0x1] sm:$0x1]
        %v328 = vperm.slane %v327, 0
        %v330 = vsel %vm297, %v321, 0
        %332 = vmatpush.msra.mxu0 0.0
        %333 = vmatpush.msra.mxu0 0.0
        %334 = vmatpush.msra.mxu0 0.0
        %335 = vmatpush.msra.mxu0 0.0
        %336 = vmatpush.msra.mxu0 0.0
        %337 = vmatpush.msra.mxu0 0.0
        %338 = vmatpush.msra.mxu0 0.0
        %339 = vmatpush.msra.mxu0 0.0
        %340 = vmatpush.msra.mxu0 0.0
        %341 = vmatpush.msra.mxu0 0.0
        %342 = vmatpush.msra.mxu0 0.0
        %343 = vmatpush.msra.mxu0 0.0
        %344 = vmatpush.msra.mxu0 %v326
        %345 = vmatpush.msra.mxu0 %v325
        %346 = vmatpush.msra.mxu0 %v324
        %347 = vmatpush.msra.mxu0 %v323
        %348 = vmatmul.f32.gmra.mxu0 %v330
        %v349 = vpop.f32.mrf.mxu0
        %v350 = vadd.f32 %v328, %v349
        %351 = vdwg.mxu0
        %v352 = vmax.f32 %v350, 0.0
        %s353 = scalar_lea.vmem %s239, 64 [#allocation2]
        %v354 = vld [vmem:[%s353] sm:$0xff]
        %v355 = vld [vmem:[%s353 + $0x8] sm:$0xff]
        %v356 = vld [vmem:[%s353 + $0x10] sm:$0xff]
        %v357 = vld [vmem:[%s353 + $0x18] sm:$0xff]
        %v358 = vld [vmem:[%s279 + $0x2] sm:$0x1]
        %v359 = vperm.slane %v358, 0
        %v361 = vsel %vm297, %v352, 0
        %363 = vmatpush.msra.mxu0 0.0
        %364 = vmatpush.msra.mxu0 0.0
        %365 = vmatpush.msra.mxu0 0.0
        %366 = vmatpush.msra.mxu0 0.0
        %367 = vmatpush.msra.mxu0 0.0
        %368 = vmatpush.msra.mxu0 0.0
        %369 = vmatpush.msra.mxu0 0.0
        %370 = vmatpush.msra.mxu0 0.0
        %371 = vmatpush.msra.mxu0 0.0
        %372 = vmatpush.msra.mxu0 0.0
        %373 = vmatpush.msra.mxu0 0.0
        %374 = vmatpush.msra.mxu0 0.0
        %375 = vmatpush.msra.mxu0 %v357
        %376 = vmatpush.msra.mxu0 %v356
        %377 = vmatpush.msra.mxu0 %v355
        %378 = vmatpush.msra.mxu0 %v354
        %379 = vmatmul.f32.gmra.mxu0 %v361
        %v380 = vpop.f32.mrf.mxu0
        %v381 = vadd.f32 %v359, %v380
        %382 = vdwg.mxu0
        %v383 = vmax.f32 %v381, 0.0
        %s384 = scalar_lea.vmem %s239, 96 [#allocation2]
        %v385 = vld [vmem:[%s384] sm:$0xff]
        %v386 = vld [vmem:[%s384 + $0x8] sm:$0xff]
        %v387 = vld [vmem:[%s384 + $0x10] sm:$0xff]
        %v388 = vld [vmem:[%s384 + $0x18] sm:$0xff]
        %v389 = vld [vmem:[%s279 + $0x3] sm:$0x1]
        %v390 = vperm.slane %v389, 0
        %v392 = vsel %vm297, %v383, 0
        %394 = vmatpush.msra.mxu0 0.0
        %395 = vmatpush.msra.mxu0 0.0
        %396 = vmatpush.msra.mxu0 0.0
        %397 = vmatpush.msra.mxu0 0.0
        %398 = vmatpush.msra.mxu0 0.0
        %399 = vmatpush.msra.mxu0 0.0
        %400 = vmatpush.msra.mxu0 0.0
        %401 = vmatpush.msra.mxu0 0.0
        %402 = vmatpush.msra.mxu0 0.0
        %403 = vmatpush.msra.mxu0 0.0
        %404 = vmatpush.msra.mxu0 0.0
        %405 = vmatpush.msra.mxu0 0.0
        %406 = vmatpush.msra.mxu0 %v388
        %407 = vmatpush.msra.mxu0 %v387
        %408 = vmatpush.msra.mxu0 %v386
        %409 = vmatpush.msra.mxu0 %v385
        %410 = vmatmul.f32.gmra.mxu0 %v392
        %v411 = vpop.f32.mrf.mxu0
        %v412 = vadd.f32 %v390, %v411
        %413 = vdwg.mxu0
        %v414 = vmax.f32 %v412, 0.0
        %s415 = scalar_lea.vmem %s239, 128 [#allocation2]
        %v416 = vld [vmem:[%s415] sm:$0xff]
        %v417 = vld [vmem:[%s415 + $0x8] sm:$0xff]
        %v418 = vld [vmem:[%s415 + $0x10] sm:$0xff]
        %v419 = vld [vmem:[%s415 + $0x18] sm:$0xff]
        %v420 = vld [vmem:[%s279 + $0x4] sm:$0x1]
        %v421 = vperm.slane %v420, 0
        %v423 = vsel %vm297, %v414, 0
        %425 = vmatpush.msra.mxu0 0.0
        %426 = vmatpush.msra.mxu0 0.0
        %427 = vmatpush.msra.mxu0 0.0
        %428 = vmatpush.msra.mxu0 0.0
        %429 = vmatpush.msra.mxu0 0.0
        %430 = vmatpush.msra.mxu0 0.0
        %431 = vmatpush.msra.mxu0 0.0
        %432 = vmatpush.msra.mxu0 0.0
        %433 = vmatpush.msra.mxu0 0.0
        %434 = vmatpush.msra.mxu0 0.0
        %435 = vmatpush.msra.mxu0 0.0
        %436 = vmatpush.msra.mxu0 0.0
        %437 = vmatpush.msra.mxu0 %v419
        %438 = vmatpush.msra.mxu0 %v418
        %439 = vmatpush.msra.mxu0 %v417
        %440 = vmatpush.msra.mxu0 %v416
        %441 = vmatmul.f32.gmra.mxu0 %v423
        %v442 = vpop.f32.mrf.mxu0
        %v443 = vadd.f32 %v421, %v442
        %444 = vdwg.mxu0
        %v445 = vmax.f32 %v443, 0.0
        %v446 = vld [vmem:[%s282] sm:$0x1]
        %v448 = vperm.slane %v446, 0
        %v450 = vmul.f32 %v445, %v448
        %v451 = vsel %vm297, %v450, 0.0
        %452 = vadd.xlane.f32.xlu0 %v451
        %v453 = vpop.xlane.xlu0 %452
        %v454 = vld [vmem:[%s285] sm:$0x1]
        %v456 = vperm.slane %v454, 0
        %v458 = vadd.f32 %v453, %v456
        %vm459 = vcmask 7168
        %460 = vst.msk [vmem:[%s289] sm:$0xff] %vm459, %v458
        %p461 = scmp.lt.s32.totalorder %s19, 1
        %s462 = scalar_select %p461, %s19, 1
        %s463 = smul.addr %s462, 8
        %s464 = scalar_lea.vmem %s5, %s463
        // Predicated region
        $region45: #{tpu_custom_call.1} parent=39 // pred_check
          %p465 = pneg %p162
        $region46: #{tpu_custom_call.1} parent=39 // pred_check_branch
          %467 = sbr.rel (%p465) target = $region48
        $region47: #{tpu_custom_call.1} parent=39 // pred_region
          _
        $region48: #{tpu_custom_call.1} parent=39 // pred_fallthru
          _
      $region40: #{tpu_custom_call.1} parent=5 // pred_fallthru
        _
      %p468 = scmp.le.s32.totalorder 2, %s14
      // Predicated region
      $region49: #{tpu_custom_call.1} parent=5 // pred_check
        %p469 = pneg %p468
      $region50: #{tpu_custom_call.1} parent=5 // pred_check_branch
        %471 = sbr.rel (%p469) target = $region52
      $region51: #{tpu_custom_call.1} parent=5 // pred_region
        %s472 = ssub.s32 %s14, 2
        // Predicated region
        $region53: #{tpu_custom_call.1} parent=51 // pred_check
          %p473 = pneg %p168
        $region54: #{tpu_custom_call.1} parent=51 // pred_check_branch
          %475 = sbr.rel (%p473) target = $region56
        $region55: #{tpu_custom_call.1} parent=51 // pred_region
          %p476 = scmp.lt.s32.totalorder %s20, 1
          %s477 = scalar_select %p476, %s20, 1
          %s478 = smul.addr %s477, 8
          %s479 = scalar_lea.vmem %s5, %s478
        $region56: #{tpu_custom_call.1} parent=51 // pred_fallthru
          _
      $region52: #{tpu_custom_call.1} parent=5 // pred_fallthru
        _
    $region6: #{tpu_custom_call.1} parent=1 // loop_footer
      %s18 = sadd.s32 1, %s14
    $region7: #{tpu_custom_call.1} parent=1 // loop_footer_branch
      %13 = sbr.rel target = $region3
    $region8: #{tpu_custom_call.1} parent=1 // loop_exit
      _
    %480 = vsyncpa [#allocation3], 1
    %s481 = scalar_lea.sflag [#allocation3], 1
    %482 = vsyncpa %s481, 1

</llo_original>
